<compile_context>
chip_gen: v5e
topology: v5e:2x2
jax: 0.10.0
libtpu: 0.0.40
codegen_flags: <defaults>
</compile_context>

<pallas_src>
import functools

import jax
import jax.numpy as jnp
from jax.experimental import pallas as pl
from jax.experimental.pallas import tpu as pltpu


def _copy_kernel(x_ref, o_ref):
    # Identity copy of the current VMEM tile (pure DMA-bound kernel).
    o_ref[...] = x_ref[...]


def _resolve_shape(total, shape):
    """Resolve a single -1 entry like torch.Tensor.view does."""
    shape = [int(s) for s in shape]
    if shape.count(-1) > 1:
        raise ValueError("only one dimension can be inferred")
    if -1 in shape:
        known = 1
        for s in shape:
            if s != -1:
                known *= s
        if known == 0 or total % known != 0:
            raise ValueError(f"cannot view tensor of {total} elements as {shape}")
        shape[shape.index(-1)] = total // known
    prod = 1
    for s in shape:
        prod *= s
    if prod != total:
        raise ValueError(f"shape {tuple(shape)} is invalid for input of size {total}")
    return tuple(shape)


# Keep at least this many grid steps (when the array is big enough) so the
# pipeline has prefetch/writeback overlap and v7x can shard across both cores.
_MIN_GRID_STEPS = 4


def _vmem_budget():
    """Generation-aware (per-buffer tile cap bytes, vmem_limit_bytes)."""
    try:
        cap = int(pltpu.get_tpu_info().vmem_capacity_bytes)
    except Exception:
        cap = 64 * 1024 * 1024  # conservative (v7x-sized) default
    # 48 MiB limit on 64 MiB-VMEM v7x, 64 MiB on 128 MiB-VMEM v5e/v6e.
    vmem_limit = min(3 * cap // 4, 64 * 1024 * 1024)
    # Input + output, each double-buffered => 4 resident tiles (+ headroom).
    tile_cap = vmem_limit // 8
    return tile_cap, vmem_limit


@functools.partial(jax.jit, static_argnames=("target", "lane", "tile_r", "vmem_limit"))
def _view_2d(x, *, target, lane, tile_r, vmem_limit):
    """Lane-dense path: total is a multiple of `lane` (itself a multiple of 128)."""
    flat = x.reshape(-1)                       # metadata-only
    rows = flat.shape[0] // lane
    slab = flat.reshape(rows, lane)            # metadata-only
    nbytes = 2 * slab.size * jnp.dtype(slab.dtype).itemsize
    out = pl.pallas_call(
        _copy_kernel,
        out_shape=jax.ShapeDtypeStruct((rows, lane), slab.dtype),
        grid=(pl.cdiv(rows, tile_r),),
        in_specs=[pl.BlockSpec((tile_r, lane), lambda i: (i, 0))],
        out_specs=pl.BlockSpec((tile_r, lane), lambda i: (i, 0)),
        compiler_params=pltpu.CompilerParams(
            dimension_semantics=("parallel",),
            vmem_limit_bytes=vmem_limit,
        ),
        cost_estimate=pl.CostEstimate(
            flops=0, transcendentals=0, bytes_accessed=nbytes),
    )(slab)
    return out.reshape(target)


@functools.partial(jax.jit, static_argnames=("target", "block", "vmem_limit"))
def _view_row(x, *, target, block, vmem_limit):
    """Fallback for totals not divisible by 128: stream a (1, total) row.

    The last grid step is a partial block; Pallas masks its store, so no
    wrapper-side pad / slice (and their extra full-array HBM passes) is needed.
    """
    row = x.reshape(1, -1)                     # metadata-only
    total = row.shape[1]
    nbytes = 2 * total * jnp.dtype(row.dtype).itemsize
    out = pl.pallas_call(
        _copy_kernel,
        out_shape=jax.ShapeDtypeStruct((1, total), row.dtype),
        grid=(pl.cdiv(total, block),),
        in_specs=[pl.BlockSpec((1, block), lambda i: (0, i))],
        out_specs=pl.BlockSpec((1, block), lambda i: (0, i)),
        compiler_params=pltpu.CompilerParams(
            dimension_semantics=("parallel",),
            vmem_limit_bytes=vmem_limit,
        ),
        cost_estimate=pl.CostEstimate(
            flops=0, transcendentals=0, bytes_accessed=nbytes),
    )(row)
    return out.reshape(target)


def pallas_view(x, shape):
    """Equivalent of `x.view(*shape)` with the copy done in a Pallas kernel."""
    total = int(x.size)
    target = _resolve_shape(total, shape)
    if total == 0:
        # Degenerate empty tensor: nothing to copy.
        return x.reshape(target)

    itemsize = jnp.dtype(x.dtype).itemsize
    tile_cap, vmem_limit = _vmem_budget()

    lane = 0
    for w in (2048, 1024, 512, 256, 128):
        if total % w == 0:
            lane = w
            break

    if lane:
        rows = total // lane
        # Sublane packing: 8 rows for 32-bit, 16 for 16-bit, 32 for 8-bit dtypes.
        packing = max(8, 32 // max(1, itemsize))
        row_bytes = lane * itemsize
        max_tile_r = max(packing, (tile_cap // row_bytes) // packing * packing)
        if rows <= packing:
            # Single block covering all rows (block == full dim satisfies the
            # (8,128) rule even when rows < 8).
            tile_r = rows
        else:
            # Split into >= _MIN_GRID_STEPS blocks when possible; rows not
            # divisible by tile_r is fine (partial edge block, masked store).
            tgt = -(-rows // _MIN_GRID_STEPS)
            tgt = -(-tgt // packing) * packing
            tile_r = max(packing, min(max_tile_r, tgt))
        return _view_2d(x, target=target, lane=lane, tile_r=tile_r,
                        vmem_limit=vmem_limit)

    # total not divisible by 128.
    if total < 128:
        block = total                        # block == full dim
    else:
        # A (1, block) tile pads to 8 sublanes in VMEM -> cap data bytes at
        # tile_cap/8 so 4 resident buffers stay well inside the VMEM limit.
        max_elems = max(1024, (tile_cap // (8 * itemsize)) // 1024 * 1024)
        block = min(max_elems, total // 128 * 128)
    return _view_row(x, target=target, block=block, vmem_limit=vmem_limit)


class View:
    """JAX/Pallas port of the PyTorch View module."""

    # TODO(synk): torch .view() is a zero-copy storage alias (and rejects
    # non-contiguous inputs); Pallas has no metadata-only equivalent, so this
    # materializes a pipelined streaming copy instead.

    def __init__(self, shape):
        self.shape = shape

    def __call__(self, x):
        return pallas_view(x, self.shape)


if __name__ == "__main__":
    key = jax.random.PRNGKey(0)
    # Input consistent with an NCHW conv-style tensor: batch=2, channels=4, 16x16.
    x = jax.random.normal(key, (2, 4, 16, 16), dtype=jnp.float32)

    # Module configured to flatten all but the batch dim: (2, -1) -> (2, 1024).
    view = View((2, -1))
    y = jax.block_until_ready(view(x))
    expected = x.reshape(2, -1)
    assert y.shape == (2, 1024), y.shape
    assert y.dtype == x.dtype
    assert bool(jnp.array_equal(y, expected))

    # 128-divisible total whose row count is NOT divisible by the row tile:
    # 4*40*48 = 7680 = 15 * 512 -> rows=15, tile_r=8, grid=2, partial edge block.
    x3 = jax.random.normal(jax.random.PRNGKey(0), (4, 40, 48), dtype=jnp.float32)
    y3 = jax.block_until_ready(View((-1, 48))(x3))
    assert y3.shape == (160, 48)
    assert bool(jnp.array_equal(y3, x3.reshape(-1, 48)))

    # Non-128-divisible totals exercise the (1, total) fallback path.
    x2 = jax.random.normal(jax.random.PRNGKey(0), (3, 5, 7), dtype=jnp.float32)  # 105 elems
    y2 = jax.block_until_ready(View((5, 21))(x2))
    assert y2.shape == (5, 21)
    assert bool(jnp.array_equal(y2, x2.reshape(5, 21)))

    x4 = jax.random.normal(jax.random.PRNGKey(0), (4, 75), dtype=jnp.float32)  # 300 elems
    y4 = jax.block_until_ready(View((300,))(x4))
    assert y4.shape == (300,)
    assert bool(jnp.array_equal(y4, x4.reshape(300)))

    print("KERNEL_OK")
</pallas_src>

<mosaic_0001>
module attributes {stable_mosaic.version = 11 : i64} {
  func.func @_copy_kernel(%arg0: i32, %arg1: memref<1x2048xf32, #tpu.memory_space<vmem>>, %arg2: memref<1x2048xf32, #tpu.memory_space<vmem>>) attributes {dimension_semantics = [#tpu.dimension_semantics<parallel>], iteration_bounds = array<i64: 1>, scalar_prefetch = 0 : i64, scratch_operands = 0 : i64, tpu.core_type = #tpu.core_type<tc>, window_params = [{transform_indices = @transform_0, window_bounds = array<i64: 1, 2048>}, {transform_indices = @transform_1, window_bounds = array<i64: 1, 2048>}]} {
    %c0 = arith.constant 0 : index
    %c0_0 = arith.constant 0 : index
    %0 = vector.load %arg1[%c0, %c0_0] : memref<1x2048xf32, #tpu.memory_space<vmem>>, vector<1x2048xf32>
    %c0_1 = arith.constant 0 : index
    %c0_2 = arith.constant 0 : index
    %1 = vector.load %arg2[%c0_1, %c0_2] : memref<1x2048xf32, #tpu.memory_space<vmem>>, vector<1x2048xf32>
    tpu.vector_store %arg2[%c0_1, %c0_2], %0 {strides = array<i32>} : memref<1x2048xf32, #tpu.memory_space<vmem>>, vector<1x2048xf32>,
    return
  }
  func.func @transform_0(%arg0: i32) -> (i32, i32) {
    %c0_i32 = arith.constant 0 : i32
    %c0_i32_0 = arith.constant 0 : i32
    return %arg0, %c0_i32 : i32, i32
  }
  func.func @transform_1(%arg0: i32) -> (i32, i32) {
    %c0_i32 = arith.constant 0 : i32
    %c0_i32_0 = arith.constant 0 : i32
    return %arg0, %c0_i32 : i32, i32
  }
}

</mosaic_0001>

<llo_original>
// kernel: _view_2d.1
$region0: #{_view_2d.1}
  #allocation0 [shape = 'u32[]', space=smem, size = 0x4, offset = 0x4, fixed_abs, tag = 'smem constant byte address 0x4 - core index']
  #allocation1 [shape = 'u32[72,128]{1,0:T(1,128)}', space=vmem, size = 0x9000, scoped, tag = 'internal scratch']
  %s0 = inlined_call_operand.vmem [shape: f32[1,2048], index: 0, kind: input, shape index: {}]
  %s1 = inlined_call_operand.vmem [shape: f32[1,2048], index: 1, kind: output, shape index: {}]
  %s2 = sld [smem:[#allocation0]]
  $region14: #{_view_2d.1} parent=0
    _
  %s4 = ssub.s32 1, %s2
  %s5 = scalar_select 0, %s4, %s2
  // Predicated region
  $region2: #{_view_2d.1} parent=0 // pred_check
    _
  $region3: #{_view_2d.1} parent=0 // pred_check_branch
    %7 = sbr.rel (0) target = $region5
  $region4: #{_view_2d.1} parent=0 // pred_region
    _
  $region5: #{_view_2d.1} parent=0 // pred_fallthru
    _
  %v8 = vld [vmem:[%s0] sm:$0xff]
  %v9 = vld [vmem:[%s0 + $0x8] sm:$0xff]
  %10 = vst [vmem:[%s1] sm:$0xff] %v8
  %11 = vst [vmem:[%s1 + $0x8] sm:$0xff] %v9
  // Predicated region
  $region6: #{_view_2d.1} parent=0 // pred_check
    _
  $region7: #{_view_2d.1} parent=0 // pred_check_branch
    %13 = sbr.rel (0) target = $region9
  $region8: #{_view_2d.1} parent=0 // pred_region
    _
  $region9: #{_view_2d.1} parent=0 // pred_fallthru
    _
  // Predicated region
  $region10: #{_view_2d.1} parent=0 // pred_check
    _
  $region11: #{_view_2d.1} parent=0 // pred_check_branch
    %15 = sbr.rel (0) target = $region13
  $region12: #{_view_2d.1} parent=0 // pred_region
    _
  $region13: #{_view_2d.1} parent=0 // pred_fallthru
    _

</llo_original>
